<compile_context>
chip_gen: v6e
topology: v6e:2x2x1
jax: 0.10.0
libtpu: 0.0.40
codegen_flags: <defaults>
</compile_context>

<pallas_src>
import functools

import jax
import jax.numpy as jnp
from jax.experimental import pallas as pl
from jax.experimental.pallas import tpu as pltpu


# --------------------------------------------------------------------------- #
# Pass 1: per-pixel statistics over streamed (1, C, NT) logit tiles.
# --------------------------------------------------------------------------- #
def _stats_kernel(pred_ref, v_ref, lab_ref, ce_ref, ent_ref, *, n_valid, tile, pad):
    x = pred_ref[0].astype(jnp.float32)                   # (C, NT) logits
    C, NT = x.shape

    xmax = jnp.max(x, axis=0, keepdims=True)               # (1, NT)
    xm = x - xmax                                          # (C, NT)
    ex = jnp.exp(xm)                                       # (C, NT)
    denom = jnp.sum(ex, axis=0, keepdims=True)             # (1, NT)
    # exact division for values used in comparisons (conf_th, v_j > v_i)
    inv = 1.0 / denom                                      # (1, NT) == max softmax prob
    logdenom = jnp.log(denom)                              # (1, NT) == CE vs argmax
    sum_exm = jnp.sum(ex * xm, axis=0, keepdims=True)      # (1, NT)

    # entropy regularizer: approx reciprocal (EUP) is fine here, never compared.
    neg_plogp = logdenom - sum_exm * pl.reciprocal(denom, approx=True)
    ent = neg_plogp / jnp.float32(2.9444)
    ent = ent * ent + jnp.float32(1e-8)
    ent = ent * ent                                        # (1, NT)

    # pseudo label = argmax over channels (first max on ties)
    cidx = jax.lax.broadcasted_iota(jnp.int32, (C, NT), 0)
    lab = jnp.min(jnp.where(x == xmax, cidx, C), axis=0, keepdims=True)   # (1, NT)

    if pad:
        # tail tile: neutralize padded pixels (lab=-1 matches no class, v=0 never
        # clears conf_th, ce/ent contribute 0 to all sums)
        pos = (pl.program_id(1) * tile
               + jax.lax.broadcasted_iota(jnp.int32, (1, NT), 1))
        valid = pos < n_valid
        v_ref[0] = jnp.where(valid, inv, jnp.float32(0.0))
        lab_ref[0] = jnp.where(valid, lab, -1)
        ce_ref[0] = jnp.where(valid, logdenom, jnp.float32(0.0))
        ent_ref[0] = jnp.where(valid, ent, jnp.float32(0.0))
    else:
        v_ref[0] = inv
        lab_ref[0] = lab
        ce_ref[0] = logdenom
        ent_ref[0] = ent


# --------------------------------------------------------------------------- #
# Pass 2: per-class within-class rank -> mask -> masked CE rows.
# Reads only the compact per-pixel rows (v, lab, logdenom); i-tiled over pixels.
# --------------------------------------------------------------------------- #
def _mask_ce_kernel(v_row_ref, lab_row_ref, ld_ref, ce_ref, *,
                    conf_th, fraction, c_pad, i_tile, j_tile, n_jblocks, unroll):
    ioff = pl.multiple_of(pl.program_id(1) * i_tile, i_tile)
    vi = v_row_ref[0, :, pl.ds(ioff, i_tile)]              # (1, IT) max prob
    li = lab_row_ref[0, :, pl.ds(ioff, i_tile)]            # (1, IT) pseudo label
    ld = ld_ref[0]                                         # (1, IT) per-pixel CE

    # confidence mask
    if 0.0 < conf_th < 1.0:
        mask = vi > jnp.float32(conf_th)
    else:
        mask = jnp.zeros(vi.shape, dtype=jnp.bool_)

    # per-class top-k(fraction) via within-class rank (exact for distinct values)
    if 0.0 < fraction < 1.0:
        onehot_i = (jax.lax.broadcasted_iota(jnp.int32, (c_pad, i_tile), 0) == li
                    ).astype(jnp.float32)                  # (Cp, IT)

        def one_block(vj, lj, cg, cnt):
            # 0/1 values are exact in bf16; MXU accumulates in f32 -> exact counts.
            greater = (jnp.transpose(vj) > vi).astype(jnp.bfloat16)          # (JT, IT)
            onehot_j = (jax.lax.broadcasted_iota(jnp.int32, (c_pad, j_tile), 0)
                        == lj)                                               # (Cp, JT)
            cg = cg + jnp.dot(onehot_j.astype(jnp.bfloat16), greater,
                              preferred_element_type=jnp.float32)            # (Cp, IT)
            cnt = cnt + jnp.sum(onehot_j.astype(jnp.float32), axis=1,
                                keepdims=True)                               # (Cp, 1)
            return cg, cnt

        cg0 = jnp.zeros((c_pad, i_tile), jnp.float32)      # accumulator lives in the
        cnt0 = jnp.zeros((c_pad, 1), jnp.float32)          # loop carry, not a big ref
        if n_jblocks == 1:
            cg, cnt = one_block(v_row_ref[0], lab_row_ref[0], cg0, cnt0)
        else:
            def body(jb, carry):
                joff = pl.multiple_of(jb * j_tile, j_tile)
                vj = v_row_ref[0, :, pl.ds(joff, j_tile)]
                lj = lab_row_ref[0, :, pl.ds(joff, j_tile)]
                return one_block(vj, lj, *carry)
            cg, cnt = jax.lax.fori_loop(0, n_jblocks, body, (cg0, cnt0),
                                        unroll=unroll)

        rank = jnp.sum(onehot_i * cg, axis=0, keepdims=True)        # (1, IT)
        count_pix = jnp.sum(onehot_i * cnt, axis=0, keepdims=True)  # (1, IT)
        # TODO(synk): torch computes k = int(count * fraction) in python float64;
        # float32 floor may differ by one pixel per class at exact-integer products.
        k = jnp.floor(count_pix * jnp.float32(fraction))
        mask = jnp.logical_or(mask, rank < k)

    ce_ref[0] = jnp.where(mask, ld, jnp.float32(0.0))


# --------------------------------------------------------------------------- #
# Wrapper
# --------------------------------------------------------------------------- #
def self_training_loss_entropy(pred, *, conf_th=0.9, fraction=0.66,
                               lambda_entropy=0.005):
    """Pallas TPU forward of SelfTrainingLossEntropy (teacher=None). Returns scalar."""
    B, C, H, W = pred.shape
    N = H * W
    pred3 = pred.reshape(B, C, N)                 # keep native dtype; cast in kernel

    # --- pixel-axis tiling (lane dense, multiples of 128) ---
    if N > 2048:
        t1, i_tile, j_tile = 2048, 1024, 512      # stats tile / rank i-tile / j-block
    else:
        t1 = i_tile = max(128, pl.cdiv(N, 128) * 128)
        j_tile = min(i_tile, 128)
    n_pad = pl.cdiv(N, t1) * t1
    if n_pad != N:
        pred3 = jnp.pad(pred3, ((0, 0), (0, 0), (0, n_pad - N)))
    n_stat_tiles = n_pad // t1
    n_rank_tiles = n_pad // i_tile
    n_jblocks = n_pad // j_tile
    c_pad = max(8, pl.cdiv(C, 8) * 8)             # MXU/sublane-friendly class dim
    itemsize = jnp.dtype(pred.dtype).itemsize

    # --- generation-aware VMEM limits (v7x: 64 MiB physical, v5e/v6e: 128 MiB) ---
    try:
        vmem_cap = int(pltpu.get_tpu_info().vmem_capacity_bytes)
    except Exception:
        vmem_cap = 64 << 20                       # conservative fallback (v7x per-TC)

    def _vmem_limit(est_bytes):
        return int(min(max(est_bytes, 32 << 20), int(vmem_cap * 0.85)))

    est1 = (2 * C * t1 * itemsize                 # double-buffered logits tile
            + 8 * C * t1 * 4                      # f32 working set (x, xm, ex, ...)
            + 4 * (2 * t1 * 4)                    # 4 output rows, double-buffered
            + (4 << 20))
    est2 = (2 * 2 * n_pad * 4                     # v / lab full rows (double-buffered)
            + 2 * 2 * i_tile * 4                  # logdenom / ce tiles
            + 2 * c_pad * i_tile * 4              # onehot_i + rank accumulator
            + 2 * (j_tile * i_tile * 2 + c_pad * j_tile * 2)   # unrolled j-block tmps
            + (4 << 20))

    # --- pass 1: streaming per-pixel stats (mem/EUP bound) ---
    frow = jax.ShapeDtypeStruct((B, 1, n_pad), jnp.float32)
    irow = jax.ShapeDtypeStruct((B, 1, n_pad), jnp.int32)
    v_rows, lab_rows, ld_rows, ent_rows = pl.pallas_call(
        functools.partial(_stats_kernel, n_valid=N, tile=t1, pad=(n_pad != N)),
        out_shape=(frow, irow, frow, frow),
        grid_spec=pltpu.PrefetchScalarGridSpec(
            num_scalar_prefetch=0,
            grid=(B, n_stat_tiles),
            in_specs=[pl.BlockSpec((1, C, t1), lambda b, t: (b, 0, t))],
            out_specs=tuple(pl.BlockSpec((1, 1, t1), lambda b, t: (b, 0, t))
                            for _ in range(4))),
        compiler_params=pltpu.CompilerParams(
            dimension_semantics=("parallel", "parallel"),
            vmem_limit_bytes=_vmem_limit(est1)),
        cost_estimate=pl.CostEstimate(
            flops=int(B * n_pad * (12 * C + 24)),
            transcendentals=int(B * n_pad * (C + 3)),
            bytes_accessed=int(B * C * n_pad * itemsize + 16 * B * n_pad)),
    )(pred3)

    # --- pass 2: per-class rank / mask / masked-CE rows (compact inputs only) ---
    rank_flops = (B * n_pad * n_pad * (2 * c_pad + 4)) if 0.0 < fraction < 1.0 \
        else B * n_pad * 4
    ce_rows = pl.pallas_call(
        functools.partial(_mask_ce_kernel, conf_th=float(conf_th),
                          fraction=float(fraction), c_pad=c_pad,
                          i_tile=i_tile, j_tile=j_tile, n_jblocks=n_jblocks,
                          unroll=2),
        out_shape=jax.ShapeDtypeStruct((B, 1, n_pad), jnp.float32),
        grid_spec=pltpu.PrefetchScalarGridSpec(
            num_scalar_prefetch=0,
            grid=(B, n_rank_tiles),
            in_specs=[pl.BlockSpec((1, 1, n_pad), lambda b, i: (b, 0, 0)),   # v row
                      pl.BlockSpec((1, 1, n_pad), lambda b, i: (b, 0, 0)),   # lab row
                      pl.BlockSpec((1, 1, i_tile), lambda b, i: (b, 0, i))], # CE tile
            out_specs=pl.BlockSpec((1, 1, i_tile), lambda b, i: (b, 0, i))),
        compiler_params=pltpu.CompilerParams(
            dimension_semantics=("parallel", "parallel"),
            vmem_limit_bytes=_vmem_limit(est2)),
        cost_estimate=pl.CostEstimate(
            flops=int(rank_flops), transcendentals=0,
            bytes_accessed=int(16 * B * n_pad)),
    )(v_rows, lab_rows, ld_rows)

    # torch: F.cross_entropy(..., reduction='none').mean() divides by ALL B*H*W pixels
    # (ignore_index / unmasked pixels contribute 0 but stay in the denominator).
    n_pix = jnp.float32(B * N)
    ce_loss = jnp.sum(ce_rows) / n_pix
    ent_loss = jnp.sum(ent_rows) / n_pix
    return ce_loss + jnp.float32(lambda_entropy) * ent_loss


# --------------------------------------------------------------------------- #
# Pure-JAX reference (same rank-based top-k formulation) for validation.
# --------------------------------------------------------------------------- #
def _ref_loss(pred, conf_th=0.9, fraction=0.66, lambda_entropy=0.005):
    B, C, H, W = pred.shape
    logits = pred.reshape(B, C, H * W).astype(jnp.float32)
    p = jax.nn.softmax(logits, axis=1)
    logp = jax.nn.log_softmax(logits, axis=1)
    lab = jnp.argmax(logits, axis=1)                                    # (B, N)
    v = jnp.max(p, axis=1)                                              # (B, N)
    same = lab[:, :, None] == lab[:, None, :]                           # (B, N, N)
    greater = v[:, None, :] > v[:, :, None]
    count = jnp.sum(same.astype(jnp.float32), axis=2)
    rank = jnp.sum((same & greater).astype(jnp.float32), axis=2)
    k = jnp.floor(count * jnp.float32(fraction))
    mask = (v > conf_th) | (rank < k)
    ce_pix = -jnp.take_along_axis(logp, lab[:, None, :], axis=1)[:, 0, :]
    ce_pix = jnp.where(mask, ce_pix, 0.0)
    ent = -jnp.sum(p * logp, axis=1) / jnp.float32(2.9444)
    ent = (ent * ent + 1e-8) ** 2
    return ce_pix.mean() + lambda_entropy * ent.mean()


if __name__ == "__main__":
    key = jax.random.PRNGKey(0)
    # NCHW logits: batch=2, classes=4, spatial=16x16 (scaled so some probs exceed 0.9)
    pred = jax.random.normal(key, (2, 4, 16, 16), dtype=jnp.float32) * 3.0

    loss = self_training_loss_entropy(pred)
    loss = jax.block_until_ready(loss)

    ref = _ref_loss(pred)
    assert jnp.isfinite(loss), "loss is not finite"
    assert jnp.allclose(loss, ref, rtol=1e-4, atol=1e-4), (loss, ref)

    print("KERNEL_OK")
</pallas_src>

<mosaic_0001>
module attributes {stable_mosaic.version = 11 : i64} {
  func.func @_stats_kernel(%arg0: i32, %arg1: i32, %arg2: memref<1x4x256xf32, #tpu.memory_space<vmem>>, %arg3: memref<1x1x256xf32, #tpu.memory_space<vmem>>, %arg4: memref<1x1x256xi32, #tpu.memory_space<vmem>>, %arg5: memref<1x1x256xf32, #tpu.memory_space<vmem>>, %arg6: memref<1x1x256xf32, #tpu.memory_space<vmem>>) attributes {dimension_semantics = [#tpu.dimension_semantics<parallel>, #tpu.dimension_semantics<parallel>], iteration_bounds = array<i64: 2, 1>, scalar_prefetch = 0 : i64, scratch_operands = 0 : i64, tpu.core_type = #tpu.core_type<tc>, window_params = [{transform_indices = @transform_0, window_bounds = array<i64: 1, 4, 256>}, {transform_indices = @transform_1, window_bounds = array<i64: 1, 1, 256>}, {transform_indices = @transform_2, window_bounds = array<i64: 1, 1, 256>}, {transform_indices = @transform_3, window_bounds = array<i64: 1, 1, 256>}, {transform_indices = @transform_4, window_bounds = array<i64: 1, 1, 256>}]} {
    %c0 = arith.constant 0 : index
    %c0_0 = arith.constant 0 : index
    %c0_1 = arith.constant 0 : index
    %0 = vector.load %arg2[%c0, %c0_0, %c0_1] : memref<1x4x256xf32, #tpu.memory_space<vmem>>, vector<1x4x256xf32>
    %1 = vector.shape_cast %0 : vector<1x4x256xf32> to vector<4x256xf32>
    %cst = arith.constant dense<0xFF800000> : vector<256xf32>
    %2 = vector.multi_reduction <maximumf>, %1, %cst [0] : vector<4x256xf32> to vector<256xf32>
    %3 = vector.shape_cast %2 : vector<256xf32> to vector<1x256xf32>
    %4 = vector.broadcast %3 : vector<1x256xf32> to vector<4x256xf32>
    %5 = arith.subf %1, %4 : vector<4x256xf32>
    %6 = math.exp %5 : vector<4x256xf32>
    %cst_2 = arith.constant dense<0.000000e+00> : vector<256xf32>
    %7 = vector.multi_reduction <add>, %6, %cst_2 [0] : vector<4x256xf32> to vector<256xf32>
    %8 = vector.shape_cast %7 : vector<256xf32> to vector<1x256xf32>
    %cst_3 = arith.constant 1.000000e+00 : f32
    %9 = vector.broadcast %cst_3 : f32 to vector<1x256xf32>
    %10 = arith.divf %9, %8 : vector<1x256xf32>
    %11 = math.log %8 : vector<1x256xf32>
    %12 = arith.mulf %6, %5 : vector<4x256xf32>
    %cst_4 = arith.constant dense<0.000000e+00> : vector<256xf32>
    %13 = vector.multi_reduction <add>, %12, %cst_4 [0] : vector<4x256xf32> to vector<256xf32>
    %14 = vector.shape_cast %13 : vector<256xf32> to vector<1x256xf32>
    %15 = tpu.reciprocal %8 {approx = true} : vector<1x256xf32> -> vector<1x256xf32>
    %16 = arith.mulf %14, %15 : vector<1x256xf32>
    %17 = arith.subf %11, %16 : vector<1x256xf32>
    %cst_5 = arith.constant 2.944400e+00 : f32
    %18 = vector.broadcast %cst_5 : f32 to vector<1x256xf32>
    %19 = arith.divf %17, %18 : vector<1x256xf32>
    %20 = arith.mulf %19, %19 : vector<1x256xf32>
    %cst_6 = arith.constant 9.99999993E-9 : f32
    %21 = vector.broadcast %cst_6 : f32 to vector<1x256xf32>
    %22 = arith.addf %20, %21 : vector<1x256xf32>
    %23 = arith.mulf %22, %22 : vector<1x256xf32>
    %24 = tpu.iota {dimensions = array<i32: 0>} : vector<4x256xi32>
    %25 = vector.broadcast %3 : vector<1x256xf32> to vector<4x256xf32>
    %26 = arith.cmpf oeq, %1, %25 : vector<4x256xf32>
    %c4_i32 = arith.constant 4 : i32
    %27 = vector.broadcast %c4_i32 : i32 to vector<4x256xi32>
    %28 = arith.select %26, %24, %27 : vector<4x256xi1>, vector<4x256xi32>
    %cst_7 = arith.constant dense<2147483647> : vector<256xi32>
    %29 = vector.multi_reduction <minsi>, %28, %cst_7 [0] : vector<4x256xi32> to vector<256xi32>
    %30 = vector.shape_cast %29 : vector<256xi32> to vector<1x256xi32>
    %c0_8 = arith.constant 0 : index
    %c0_9 = arith.constant 0 : index
    %c0_10 = arith.constant 0 : index
    %31 = vector.load %arg3[%c0_8, %c0_9, %c0_10] : memref<1x1x256xf32, #tpu.memory_space<vmem>>, vector<1x1x256xf32>
    %32 = vector.shape_cast %31 : vector<1x1x256xf32> to vector<1x256xf32>
    %33 = vector.shape_cast %10 : vector<1x256xf32> to vector<1x1x256xf32>
    tpu.vector_store %arg3[%c0_8, %c0_9, %c0_10], %33 {strides = array<i32>} : memref<1x1x256xf32, #tpu.memory_space<vmem>>, vector<1x1x256xf32>,
    %c0_11 = arith.constant 0 : index
    %c0_12 = arith.constant 0 : index
    %c0_13 = arith.constant 0 : index
    %34 = vector.load %arg4[%c0_11, %c0_12, %c0_13] : memref<1x1x256xi32, #tpu.memory_space<vmem>>, vector<1x1x256xi32>
    %35 = vector.shape_cast %34 : vector<1x1x256xi32> to vector<1x256xi32>
    %36 = vector.shape_cast %30 : vector<1x256xi32> to vector<1x1x256xi32>
    tpu.vector_store %arg4[%c0_11, %c0_12, %c0_13], %36 {strides = array<i32>} : memref<1x1x256xi32, #tpu.memory_space<vmem>>, vector<1x1x256xi32>,
    %c0_14 = arith.constant 0 : index
    %c0_15 = arith.constant 0 : index
    %c0_16 = arith.constant 0 : index
    %37 = vector.load %arg5[%c0_14, %c0_15, %c0_16] : memref<1x1x256xf32, #tpu.memory_space<vmem>>, vector<1x1x256xf32>
    %38 = vector.shape_cast %37 : vector<1x1x256xf32> to vector<1x256xf32>
    %39 = vector.shape_cast %11 : vector<1x256xf32> to vector<1x1x256xf32>
    tpu.vector_store %arg5[%c0_14, %c0_15, %c0_16], %39 {strides = array<i32>} : memref<1x1x256xf32, #tpu.memory_space<vmem>>, vector<1x1x256xf32>,
    %c0_17 = arith.constant 0 : index
    %c0_18 = arith.constant 0 : index
    %c0_19 = arith.constant 0 : index
    %40 = vector.load %arg6[%c0_17, %c0_18, %c0_19] : memref<1x1x256xf32, #tpu.memory_space<vmem>>, vector<1x1x256xf32>
    %41 = vector.shape_cast %40 : vector<1x1x256xf32> to vector<1x256xf32>
    %42 = vector.shape_cast %23 : vector<1x256xf32> to vector<1x1x256xf32>
    tpu.vector_store %arg6[%c0_17, %c0_18, %c0_19], %42 {strides = array<i32>} : memref<1x1x256xf32, #tpu.memory_space<vmem>>, vector<1x1x256xf32>,
    return
  }
  func.func @transform_0(%arg0: i32, %arg1: i32) -> (i32, i32, i32) {
    %c0_i32 = arith.constant 0 : i32
    %c0_i32_0 = arith.constant 0 : i32
    return %arg0, %c0_i32, %arg1 : i32, i32, i32
  }
  func.func @transform_1(%arg0: i32, %arg1: i32) -> (i32, i32, i32) {
    %c0_i32 = arith.constant 0 : i32
    %c0_i32_0 = arith.constant 0 : i32
    return %arg0, %c0_i32, %arg1 : i32, i32, i32
  }
  func.func @transform_2(%arg0: i32, %arg1: i32) -> (i32, i32, i32) {
    %c0_i32 = arith.constant 0 : i32
    %c0_i32_0 = arith.constant 0 : i32
    return %arg0, %c0_i32, %arg1 : i32, i32, i32
  }
  func.func @transform_3(%arg0: i32, %arg1: i32) -> (i32, i32, i32) {
    %c0_i32 = arith.constant 0 : i32
    %c0_i32_0 = arith.constant 0 : i32
    return %arg0, %c0_i32, %arg1 : i32, i32, i32
  }
  func.func @transform_4(%arg0: i32, %arg1: i32) -> (i32, i32, i32) {
    %c0_i32 = arith.constant 0 : i32
    %c0_i32_0 = arith.constant 0 : i32
    return %arg0, %c0_i32, %arg1 : i32, i32, i32
  }
}

</mosaic_0001>

<llo_original>
// kernel: tpu_custom_call.1
$region0: #{tpu_custom_call.1}
  #allocation0 [shape = 'u32[]', space=smem, size = 0x4, offset = 0x4, fixed_abs, tag = 'smem constant byte address 0x4 - core index']
  #allocation1 [shape = 'u32[144,128]{1,0:T(1,128)}', space=vmem, size = 0x12000, scoped, tag = 'internal scratch']
  %s0 = inlined_call_operand.hbm [shape: f32[2,4,256], index: 0, kind: input, shape index: {}]
  %s1 = inlined_call_operand.hbm [shape: f32[2,1,256], index: 1, kind: output, shape index: {0}]
  %s2 = inlined_call_operand.hbm [shape: s32[2,1,256], index: 2, kind: output, shape index: {1}]
  %s3 = inlined_call_operand.hbm [shape: f32[2,1,256], index: 3, kind: output, shape index: {2}]
  %s4 = inlined_call_operand.hbm [shape: f32[2,1,256], index: 4, kind: output, shape index: {3}]
  %5 = xla_tuple %s1, %s2, %s3, %s4
  %s6 = sld [smem:[#allocation0]]
  $region65: #{tpu_custom_call.1} parent=0
    _
  %s8 = ssub.s32 1, %s6
  %s9 = scalar_select 0, %s8, %s6
  $region1: #{tpu_custom_call.1} parent=0
    #allocation2 [shape = 'u8[8192]{0}', space=vmem, size = 0x2000, scoped, tag = 'input window, operand 0']
    #allocation3 [shape = 's32[2]{0}', space=sflag, size = 0x8, scoped, tag = 'scoped memory for tpu_custom_call.1']
    #allocation4 [shape = 's32[2]{0}', space=sflag, size = 0x8, scoped, tag = 'scoped memory for tpu_custom_call.1']
    #allocation5 [shape = 'u8[2048]{0}', space=vmem, size = 0x800, scoped, tag = 'output window, operand 0']
    #allocation6 [shape = 'u8[2048]{0}', space=vmem, size = 0x800, scoped, tag = 'output window, operand 1']
    #allocation7 [shape = 's32[2]{0}', space=sflag, size = 0x8, scoped, tag = 'scoped memory for tpu_custom_call.1']
    #allocation8 [shape = 'u8[2048]{0}', space=vmem, size = 0x800, scoped, tag = 'output window, operand 2']
    #allocation9 [shape = 'u8[2048]{0}', space=vmem, size = 0x800, scoped, tag = 'output window, operand 3']
    #allocation10 [shape = 's32[2]{0}', space=sflag, size = 0x8, scoped, tag = 'scoped memory for tpu_custom_call.1']
    %10 = vsyncpa [#allocation3], 0
    %s11 = scalar_lea.sflag [#allocation3], 1
    %12 = vsyncpa %s11, 0
    %13 = vsyncpa [#allocation4], 0
    %s14 = scalar_lea.sflag [#allocation4], 1
    %15 = vsyncpa %s14, 0
    %16 = vsyncpa [#allocation7], 0
    %s17 = scalar_lea.sflag [#allocation7], 1
    %18 = vsyncpa %s17, 0
    %19 = vsyncpa [#allocation10], 0
    %s20 = scalar_lea.sflag [#allocation10], 1
    %21 = vsyncpa %s20, 0
    loop: start=0, step=1, limit=4
    $region2: #{tpu_custom_call.1} parent=1 // loop_pre_header
      _
    $region3: #{tpu_custom_call.1} parent=1 // loop_header
      %s23 = sphi 0, %s27
      %p24 = scmp.ge.s32.totalorder %s23, 4
      %s30 = sphi 0, %s42
      %s31 = sphi 0, %s38
      %s32 = sphi 0, %s30
      %s33 = sphi 0, %s31
      %s34 = sphi 0, %s32
      %s35 = sphi 0, %s33
      %s47 = sphi 0, %s49
      %s50 = sphi 0, %s47
      %s51 = sphi 0, %s50
      %s67 = sphi 0, %s51
      %s75 = sphi 0, %s77
      %s78 = sphi 0, %s75
      %s79 = sphi 0, %s78
      %s95 = sphi 0, %s79
      %s103 = sphi 0, %s105
      %s106 = sphi 0, %s103
      %s107 = sphi 0, %s106
      %s123 = sphi 0, %s107
      %s131 = sphi 0, %s133
      %s134 = sphi 0, %s131
      %s135 = sphi 0, %s134
      %s151 = sphi 0, %s135
      %s159 = sphi 0, %s161
      %s162 = sphi 0, %s159
      %s163 = sphi 0, %s162
      %s179 = sphi 0, %s163
    $region4: #{tpu_custom_call.1} parent=1 // loop_header_branch
      %26 = sbr.rel (%p24) target = $region8
    $region5: #{tpu_custom_call.1} parent=1 // loop_body
      %s28 = ssub.s32 %s23, 1
      %s29 = ssub.s32 %s23, 2
      %s36 = sadd.s32 1, %s31
      %p37 = scmp.ge.s32.totalorder %s36, 1
      %s38 = scalar_select %p37, 0, %s36
      %s39 = sadd.s32 1, %s30
      %s40 = scalar_select %p37, %s39, %s30
      %p41 = scmp.ge.s32.totalorder %s40, 2
      %s42 = scalar_select %p41, 0, %s40
      %s43 = ssub.s32 %s30, %s42
      %s44 = ssub.s32 %s31, %s38
      %s45 = sor.u32 %s43, %s44
      %p46 = scmp.eq.s32.totalorder %s45, 0
      %s48 = sadd.s32 %s47, 1
      %s49 = scalar_select %p46, %s47, %s48
      %p52 = pneg %p46
      %p53 = scmp.eq.s32.totalorder %s23, 1
      %p54 = por %p52, %p53
      %p55 = scmp.ne.s32.totalorder %s47, %s50
      %p56 = scmp.eq.s32.totalorder %s23, 0
      %p57 = por %p55, %p56
      %p58 = scmp.ne.s32.totalorder %s47, %s50
      %p59 = scmp.eq.s32.totalorder %s28, 1
      %p60 = por %p58, %p59
      %p61 = scmp.ne.s32.totalorder %s50, %s51
      %p62 = scmp.eq.s32.totalorder %s28, 0
      %p63 = por %p61, %p62
      %p64 = scmp.ne.s32.totalorder %s50, %s51
      %p65 = scmp.eq.s32.totalorder %s29, 1
      %p66 = por %p64, %p65
      %p68 = scmp.ne.s32.totalorder %s51, %s67
      %p69 = scmp.eq.s32.totalorder %s29, 0
      %p70 = por %p68, %p69
      %s71 = ssub.s32 %s30, %s42
      %s72 = ssub.s32 %s31, %s38
      %s73 = sor.u32 %s71, %s72
      %p74 = scmp.eq.s32.totalorder %s73, 0
      %s76 = sadd.s32 %s75, 1
      %s77 = scalar_select %p74, %s75, %s76
      %p80 = pneg %p74
      %p81 = scmp.eq.s32.totalorder %s23, 1
      %p82 = por %p80, %p81
      %p83 = scmp.ne.s32.totalorder %s75, %s78
      %p84 = scmp.eq.s32.totalorder %s23, 0
      %p85 = por %p83, %p84
      %p86 = scmp.ne.s32.totalorder %s75, %s78
      %p87 = scmp.eq.s32.totalorder %s28, 1
      %p88 = por %p86, %p87
      %p89 = scmp.ne.s32.totalorder %s78, %s79
      %p90 = scmp.eq.s32.totalorder %s28, 0
      %p91 = por %p89, %p90
      %p92 = scmp.ne.s32.totalorder %s78, %s79
      %p93 = scmp.eq.s32.totalorder %s29, 1
      %p94 = por %p92, %p93
      %p96 = scmp.ne.s32.totalorder %s79, %s95
      %p97 = scmp.eq.s32.totalorder %s29, 0
      %p98 = por %p96, %p97
      %s99 = ssub.s32 %s30, %s42
      %s100 = ssub.s32 %s31, %s38
      %s101 = sor.u32 %s99, %s100
      %p102 = scmp.eq.s32.totalorder %s101, 0
      %s104 = sadd.s32 %s103, 1
      %s105 = scalar_select %p102, %s103, %s104
      %p108 = pneg %p102
      %p109 = scmp.eq.s32.totalorder %s23, 1
      %p110 = por %p108, %p109
      %p111 = scmp.ne.s32.totalorder %s103, %s106
      %p112 = scmp.eq.s32.totalorder %s23, 0
      %p113 = por %p111, %p112
      %p114 = scmp.ne.s32.totalorder %s103, %s106
      %p115 = scmp.eq.s32.totalorder %s28, 1
      %p116 = por %p114, %p115
      %p117 = scmp.ne.s32.totalorder %s106, %s107
      %p118 = scmp.eq.s32.totalorder %s28, 0
      %p119 = por %p117, %p118
      %p120 = scmp.ne.s32.totalorder %s106, %s107
      %p121 = scmp.eq.s32.totalorder %s29, 1
      %p122 = por %p120, %p121
      %p124 = scmp.ne.s32.totalorder %s107, %s123
      %p125 = scmp.eq.s32.totalorder %s29, 0
      %p126 = por %p124, %p125
      %s127 = ssub.s32 %s30, %s42
      %s128 = ssub.s32 %s31, %s38
      %s129 = sor.u32 %s127, %s128
      %p130 = scmp.eq.s32.totalorder %s129, 0
      %s132 = sadd.s32 %s131, 1
      %s133 = scalar_select %p130, %s131, %s132
      %p136 = pneg %p130
      %p137 = scmp.eq.s32.totalorder %s23, 1
      %p138 = por %p136, %p137
      %p139 = scmp.ne.s32.totalorder %s131, %s134
      %p140 = scmp.eq.s32.totalorder %s23, 0
      %p141 = por %p139, %p140
      %p142 = scmp.ne.s32.totalorder %s131, %s134
      %p143 = scmp.eq.s32.totalorder %s28, 1
      %p144 = por %p142, %p143
      %p145 = scmp.ne.s32.totalorder %s134, %s135
      %p146 = scmp.eq.s32.totalorder %s28, 0
      %p147 = por %p145, %p146
      %p148 = scmp.ne.s32.totalorder %s134, %s135
      %p149 = scmp.eq.s32.totalorder %s29, 1
      %p150 = por %p148, %p149
      %p152 = scmp.ne.s32.totalorder %s135, %s151
      %p153 = scmp.eq.s32.totalorder %s29, 0
      %p154 = por %p152, %p153
      %s155 = ssub.s32 %s30, %s42
      %s156 = ssub.s32 %s31, %s38
      %s157 = sor.u32 %s155, %s156
      %p158 = scmp.eq.s32.totalorder %s157, 0
      %s160 = sadd.s32 %s159, 1
      %s161 = scalar_select %p158, %s159, %s160
      %p164 = pneg %p158
      %p165 = scmp.eq.s32.totalorder %s23, 1
      %p166 = por %p164, %p165
      %p167 = scmp.ne.s32.totalorder %s159, %s162
      %p168 = scmp.eq.s32.totalorder %s23, 0
      %p169 = por %p167, %p168
      %p170 = scmp.ne.s32.totalorder %s159, %s162
      %p171 = scmp.eq.s32.totalorder %s28, 1
      %p172 = por %p170, %p171
      %p173 = scmp.ne.s32.totalorder %s162, %s163
      %p174 = scmp.eq.s32.totalorder %s28, 0
      %p175 = por %p173, %p174
      %p176 = scmp.ne.s32.totalorder %s162, %s163
      %p177 = scmp.eq.s32.totalorder %s29, 1
      %p178 = por %p176, %p177
      %p180 = scmp.ne.s32.totalorder %s163, %s179
      %p181 = scmp.eq.s32.totalorder %s29, 0
      %p182 = por %p180, %p181
      %p183 = scmp.le.s32.totalorder 1, %s23
      %p184 = scmp.lt.s32.totalorder %s23, 3
      %p185 = pnand %p183, %p184
      %p186 = pneg %p185
      // Predicated region
      $region9: #{tpu_custom_call.1} parent=5 // pred_check
        _
      $region10: #{tpu_custom_call.1} parent=5 // pred_check_branch
        %188 = sbr.rel (%p185) target = $region12
      $region11: #{tpu_custom_call.1} parent=5 // pred_region
        %s189 = ssub.s32 %s23, 1
      $region12: #{tpu_custom_call.1} parent=5 // pred_fallthru
        _
      %p190 = scmp.lt.s32.totalorder %s23, 2
      // Predicated region
      $region13: #{tpu_custom_call.1} parent=5 // pred_check
        %p191 = pneg %p190
      $region14: #{tpu_custom_call.1} parent=5 // pred_check_branch
        %193 = sbr.rel (%p191) target = $region16
      $region15: #{tpu_custom_call.1} parent=5 // pred_region
        // Predicated region
        $region17: #{tpu_custom_call.1} parent=15 // pred_check
          %p194 = pneg %p57
        $region18: #{tpu_custom_call.1} parent=15 // pred_check_branch
          %196 = sbr.rel (%p194) target = $region20
        $region19: #{tpu_custom_call.1} parent=15 // pred_region
          %s197 = sand.u32 %s47, 1
          %s198 = scalar_lea.sflag [#allocation3], %s197
          %s199 = sand.u32 %s47, 1
          %s200 = smul.addr %s199, 8
          %s201 = scalar_lea.vmem [#allocation2], %s200
          %s202 = smul.u32 2, %s31
          %s204 = ssub.s32 128, 128
          %205 = vsyncadd %s198, %s204
          %s206 = smul.addr %s30, 2
          %s207 = sadd.s32 %s202, %s206
          %s208 = smul.addr %s207, 64
          %s209 = scalar_lea.hbm %s0, %s208
          %s211 = sshll.u32 %s201, 4
          %s212 = int_to_ptr.vmem [resolvable:$true] %s211
          %214 = dma.hbm_to_vmem [thread:$0]  %s209, 128, %s212, %s198
        $region20: #{tpu_custom_call.1} parent=15 // pred_fallthru
          _
      $region16: #{tpu_custom_call.1} parent=5 // pred_fallthru
        _
      %p215 = scmp.le.s32.totalorder 1, %s23
      %p216 = scmp.lt.s32.totalorder %s23, 3
      %p217 = pnand %p215, %p216
      %p218 = pneg %p217
      // Predicated region
      $region21: #{tpu_custom_call.1} parent=5 // pred_check
        _
      $region22: #{tpu_custom_call.1} parent=5 // pred_check_branch
        %220 = sbr.rel (%p217) target = $region24
      $region23: #{tpu_custom_call.1} parent=5 // pred_region
        %s221 = ssub.s32 %s23, 1
        %s222 = sand.u32 %s50, 1
        %s223 = scalar_lea.sflag [#allocation3], %s222
        %s224 = sand.u32 %s50, 1
        %s225 = smul.addr %s224, 8
        %s226 = scalar_lea.vmem [#allocation2], %s225
        // Predicated region
        $region25: #{tpu_custom_call.1} parent=23 // pred_check
          %p227 = pneg %p63
        $region26: #{tpu_custom_call.1} parent=23 // pred_check_branch
          %229 = sbr.rel (%p227) target = $region28
        $region27: #{tpu_custom_call.1} parent=23 // pred_region
          %230 = dma.done %s223, 128
        $region28: #{tpu_custom_call.1} parent=23 // pred_fallthru
          _
        %s231 = sand.u32 %s50, 1
        %s232 = scalar_lea.sflag [#allocation3], %s231
        %s233 = sand.u32 %s50, 1
        %s234 = smul.addr %s233, 8
        %s235 = scalar_lea.vmem [#allocation2], %s234
        %p236 = pneg %p63
        %p237 = pneg %p60
        %p238 = pneg %p91
        %p239 = pneg %p88
        %s240 = sand.u32 %s78, 1
        %s241 = scalar_lea.sflag [#allocation4], %s240
        %s242 = sand.u32 %s78, 1
        %s243 = smul.addr %s242, 2
        %s244 = scalar_lea.vmem [#allocation5], %s243
        %p245 = pneg %p119
        %p246 = pneg %p116
        %s247 = sand.u32 %s28, 1
        %s248 = scalar_lea.sflag [#allocation7], %s247
        %s249 = sand.u32 %s106, 1
        %s250 = smul.addr %s249, 2
        %s251 = scalar_lea.vmem [#allocation6], %s250
        %p252 = pneg %p147
        %p253 = pneg %p144
        %s254 = sand.u32 %s28, 1
        %s255 = scalar_lea.sflag [#allocation7], %s254
        %s256 = sand.u32 %s134, 1
        %s257 = smul.addr %s256, 2
        %s258 = scalar_lea.vmem [#allocation8], %s257
        %p259 = pneg %p175
        %p260 = pneg %p172
        %s261 = sand.u32 %s162, 1
        %s262 = scalar_lea.sflag [#allocation10], %s261
        %s263 = sand.u32 %s162, 1
        %s264 = smul.addr %s263, 2
        %s265 = scalar_lea.vmem [#allocation9], %s264
        %s266 = smul.u32 2, %s33
        %s267 = smul.u32 2, %s33
        %s268 = smul.u32 2, %s33
        %s269 = smul.u32 2, %s33
        %s270 = smul.u32 2, %s33
        %v271 = vld [vmem:[%s226] sm:$0xff]
        %v273 = vcombine.high %v271, %v271
        %vm275 = vcmask 1043456
        %v276 = vsel %vm275, %v271, -inf
        %v277 = vrot.slane %v276, 4
        %v278 = vmax.f32 %v276, %v277
        %v279 = vrot.slane %v278, 2
        %v280 = vmax.f32 %v278, %v279
        %v281 = vrot.slane %v280, 1
        %v282 = vmax.f32 %v280, %v281
        %v283 = vsel %vm275, %v273, -inf
        %v284 = vrot.slane %v283, 4
        %v285 = vmax.f32 %v283, %v284
        %v286 = vrot.slane %v285, 2
        %v287 = vmax.f32 %v285, %v286
        %v288 = vrot.slane %v287, 1
        %v289 = vmax.f32 %v287, %v288
        %v292 = vcombine.low %v282, %v289
        %v294 = vsub.f32 %v271, %v292
        %v295 = vmul.f32 %v294, 1.442695
        %v296 = vpow.pop %v295
        %v298 = vcombine.high %v296, %v296
        %v300 = vsel %vm275, %v296, 0.0
        %v301 = vrot.slane %v300, 4
        %v302 = vadd.f32 %v300, %v301
        %v303 = vrot.slane %v302, 2
        %v304 = vadd.f32 %v302, %v303
        %v305 = vrot.slane %v304, 1
        %v306 = vadd.f32 %v304, %v305
        %v307 = vsel %vm275, %v298, 0.0
        %v308 = vrot.slane %v307, 4
        %v309 = vadd.f32 %v307, %v308
        %v310 = vrot.slane %v309, 2
        %v311 = vadd.f32 %v309, %v310
        %v312 = vrot.slane %v311, 1
        %v313 = vadd.f32 %v311, %v312
        %v314 = vrcp.pop %v306
        %v315 = vmul.f32 1.0, %v314
        %v316 = vrcp.pop %v313
        %v317 = vmul.f32 1.0, %v316
        %v318 = vlog2.pop %v306
        %v319 = vmul.f32 %v318, 0.6931472
        %v320 = vlog2.pop %v313
        %v321 = vmul.f32 %v320, 0.6931472
        %v322 = vmul.f32 %v296, %v294
        %v324 = vcombine.high %v322, %v322
        %v326 = vsel %vm275, %v322, 0.0
        %v327 = vrot.slane %v326, 4
        %v328 = vadd.f32 %v326, %v327
        %v329 = vrot.slane %v328, 2
        %v330 = vadd.f32 %v328, %v329
        %v331 = vrot.slane %v330, 1
        %v332 = vadd.f32 %v330, %v331
        %v333 = vsel %vm275, %v324, 0.0
        %v334 = vrot.slane %v333, 4
        %v335 = vadd.f32 %v333, %v334
        %v336 = vrot.slane %v335, 2
        %v337 = vadd.f32 %v335, %v336
        %v338 = vrot.slane %v337, 1
        %v339 = vadd.f32 %v337, %v338
        %v340 = vrcp.pop %v306
        %v341 = vrcp.pop %v313
        %v342 = vmul.f32 %v332, %v340
        %v343 = vmul.f32 %v339, %v341
        %v344 = vsub.f32 %v319, %v342
        %v345 = vsub.f32 %v321, %v343
        %v346 = vrcp.pop 2.9444
        %v347 = vmul.f32 %v344, %v346
        %v348 = vmul.f32 %v345, %v346
        %v349 = vmul.f32 %v347, %v347
        %v350 = vmul.f32 %v348, %v348
        %v351 = vadd.f32 %v349, 1e-08
        %v352 = vadd.f32 %v350, 1e-08
        %v353 = vmul.f32 %v351, %v351
        %v354 = vmul.f32 %v352, %v352
        %v355 = vlaneseq
        %v356 = vshrl.u32 %v355, 7
        %vm357 = vcmp.eq.f32.partialorder %v271, %v292
        %v359 = vunpack.c.l.s4 839922192
        %v360 = vunpack.c.0.s8 %v359
        %v361 = vlaneseq
        %v362 = vshrl.u32 %v361, 7
        %v363 = vsub.s32 %v360, %v362
        %v364 = vrot.slane %v356, %v363
        %v365 = vsel %vm357, %v364, 4
        %v366 = vcombine.high %v365, %v365
        %v367 = vsel %vm275, %v365, 2147483647
        %v368 = vrot.slane %v367, 4
        %vm369 = vcmp.lt.s32.totalorder %v367, %v368
        %v370 = vsel %vm369, %v367, %v368
        %v371 = vrot.slane %v370, 2
        %vm372 = vcmp.lt.s32.totalorder %v370, %v371
        %v373 = vsel %vm372, %v370, %v371
        %v374 = vrot.slane %v373, 1
        %vm375 = vcmp.lt.s32.totalorder %v373, %v374
        %v376 = vsel %vm375, %v373, %v374
        %v377 = vsel %vm275, %v366, 2147483647
        %v378 = vrot.slane %v377, 4
        %vm379 = vcmp.lt.s32.totalorder %v377, %v378
        %v380 = vsel %vm379, %v377, %v378
        %v381 = vrot.slane %v380, 2
        %vm382 = vcmp.lt.s32.totalorder %v380, %v381
        %v383 = vsel %vm382, %v380, %v381
        %v384 = vrot.slane %v383, 1
        %vm385 = vcmp.lt.s32.totalorder %v383, %v384
        %v386 = vsel %vm385, %v383, %v384
        %v389 = vcombine.low %v315, %v317
        %v391 = vunpack.c.l.s4 1966171168
        %v392 = vunpack.c.0.s8 %v391
        %v393 = vlaneseq
        %v394 = vshrl.u32 %v393, 7
        %v395 = vsub.s32 %v392, %v394
        %v396 = vrot.slane %v389, %v395
        %v398 = vunpack.c.l.s4 1966171168
        %v399 = vunpack.c.0.s8 %v398
        %v400 = vlaneseq
        %v401 = vshrl.u32 %v400, 7
        %v402 = vsub.s32 %v399, %v401
        %v403 = vrot.slane %v396, %v402
        %v405 = vlaneseq
        %vm406 = vcmp.ge.s32.totalorder %v405, 0
        %vm407 = vcmp.lt.s32.totalorder %v405, 256
        %vm408 = vmand %vm406, %vm407
        %409 = vst.msk [vmem:[%s244] sm:$0x3] %vm408, %v403
        %v410 = vcombine.low %v376, %v386
        %v412 = vunpack.c.l.s4 1966171168
        %v413 = vunpack.c.0.s8 %v412
        %v414 = vlaneseq
        %v415 = vshrl.u32 %v414, 7
        %v416 = vsub.s32 %v413, %v415
        %v417 = vrot.slane %v410, %v416
        %v419 = vunpack.c.l.s4 1966171168
        %v420 = vunpack.c.0.s8 %v419
        %v421 = vlaneseq
        %v422 = vshrl.u32 %v421, 7
        %v423 = vsub.s32 %v420, %v422
        %v424 = vrot.slane %v417, %v423
        %425 = vst.msk [vmem:[%s251] sm:$0x3] %vm408, %v424
        %v428 = vcombine.low %v319, %v321
        %v430 = vunpack.c.l.s4 1966171168
        %v431 = vunpack.c.0.s8 %v430
        %v432 = vlaneseq
        %v433 = vshrl.u32 %v432, 7
        %v434 = vsub.s32 %v431, %v433
        %v435 = vrot.slane %v428, %v434
        %v437 = vunpack.c.l.s4 1966171168
        %v438 = vunpack.c.0.s8 %v437
        %v439 = vlaneseq
        %v440 = vshrl.u32 %v439, 7
        %v441 = vsub.s32 %v438, %v440
        %v442 = vrot.slane %v435, %v441
        %444 = vst.msk [vmem:[%s258] sm:$0x3] %vm408, %v442
        %v447 = vcombine.low %v353, %v354
        %v449 = vunpack.c.l.s4 1966171168
        %v450 = vunpack.c.0.s8 %v449
        %v451 = vlaneseq
        %v452 = vshrl.u32 %v451, 7
        %v453 = vsub.s32 %v450, %v452
        %v454 = vrot.slane %v447, %v453
        %v456 = vunpack.c.l.s4 1966171168
        %v457 = vunpack.c.0.s8 %v456
        %v458 = vlaneseq
        %v459 = vshrl.u32 %v458, 7
        %v460 = vsub.s32 %v457, %v459
        %v461 = vrot.slane %v454, %v460
        %463 = vst.msk [vmem:[%s265] sm:$0x3] %vm408, %v461
        %s464 = sand.u32 %s78, 1
        %s465 = scalar_lea.sflag [#allocation4], %s464
        %s466 = sand.u32 %s78, 1
        %s467 = smul.addr %s466, 2
        %s468 = scalar_lea.vmem [#allocation5], %s467
        %s469 = sand.u32 %s28, 1
        %s470 = scalar_lea.sflag [#allocation7], %s469
        %s471 = sand.u32 %s106, 1
        %s472 = smul.addr %s471, 2
        %s473 = scalar_lea.vmem [#allocation6], %s472
        %s474 = sand.u32 %s28, 1
        %s475 = scalar_lea.sflag [#allocation7], %s474
        %s476 = sand.u32 %s134, 1
        %s477 = smul.addr %s476, 2
        %s478 = scalar_lea.vmem [#allocation8], %s477
        %s479 = sand.u32 %s162, 1
        %s480 = scalar_lea.sflag [#allocation10], %s479
        %s481 = sand.u32 %s162, 1
        %s482 = smul.addr %s481, 2
        %s483 = scalar_lea.vmem [#allocation9], %s482
        // Predicated region
        $region29: #{tpu_custom_call.1} parent=23 // pred_check
          %p484 = pneg %p88
        $region30: #{tpu_custom_call.1} parent=23 // pred_check_branch
          %486 = sbr.rel (%p484) target = $region32
        $region31: #{tpu_custom_call.1} parent=23 // pred_region
          %s487 = smul.u32 2, %s33
          %s489 = ssub.s32 32, 32
          %490 = vsyncadd %s465, %s489
          %s491 = smul.addr %s32, 2
          %s492 = sadd.s32 %s487, %s491
          %s493 = smul.addr %s492, 16
          %s494 = scalar_lea.hbm %s1, %s493
          %s496 = sshll.u32 %s468, 4
          %s497 = int_to_ptr.vmem [resolvable:$true] %s496
          %499 = dma.vmem_to_hbm [thread:$0]  %s497, 32, %s494, %s465
        $region32: #{tpu_custom_call.1} parent=23 // pred_fallthru
          _
        // Predicated region
        $region33: #{tpu_custom_call.1} parent=23 // pred_check
          %p500 = pneg %p116
        $region34: #{tpu_custom_call.1} parent=23 // pred_check_branch
          %502 = sbr.rel (%p500) target = $region36
        $region35: #{tpu_custom_call.1} parent=23 // pred_region
          %s503 = smul.u32 2, %s33
          %s505 = ssub.s32 32, 32
          %506 = vsyncadd %s470, %s505
          %s507 = smul.addr %s32, 2
          %s508 = sadd.s32 %s503, %s507
          %s509 = smul.addr %s508, 16
          %s510 = scalar_lea.hbm %s2, %s509
          %s512 = sshll.u32 %s473, 4
          %s513 = int_to_ptr.vmem [resolvable:$true] %s512
          %515 = dma.vmem_to_hbm [thread:$0]  %s513, 32, %s510, %s470
        $region36: #{tpu_custom_call.1} parent=23 // pred_fallthru
          _
        // Predicated region
        $region37: #{tpu_custom_call.1} parent=23 // pred_check
          %p516 = pneg %p144
        $region38: #{tpu_custom_call.1} parent=23 // pred_check_branch
          %518 = sbr.rel (%p516) target = $region40
        $region39: #{tpu_custom_call.1} parent=23 // pred_region
          %s519 = smul.u32 2, %s33
          %s521 = ssub.s32 32, 32
          %522 = vsyncadd %s475, %s521
          %s523 = smul.addr %s32, 2
          %s524 = sadd.s32 %s519, %s523
          %s525 = smul.addr %s524, 16
          %s526 = scalar_lea.hbm %s3, %s525
          %s528 = sshll.u32 %s478, 4
          %s529 = int_to_ptr.vmem [resolvable:$true] %s528
          %531 = dma.vmem_to_hbm [thread:$0]  %s529, 32, %s526, %s475
        $region40: #{tpu_custom_call.1} parent=23 // pred_fallthru
          _
        // Predicated region
        $region41: #{tpu_custom_call.1} parent=23 // pred_check
          %p532 = pneg %p172
        $region42: #{tpu_custom_call.1} parent=23 // pred_check_branch
          %534 = sbr.rel (%p532) target = $region44
        $region43: #{tpu_custom_call.1} parent=23 // pred_region
          %s535 = smul.u32 2, %s33
          %s537 = ssub.s32 32, 32
          %538 = vsyncadd %s480, %s537
          %s539 = smul.addr %s32, 2
          %s540 = sadd.s32 %s535, %s539
          %s541 = smul.addr %s540, 16
          %s542 = scalar_lea.hbm %s4, %s541
          %s544 = sshll.u32 %s483, 4
          %s545 = int_to_ptr.vmem [resolvable:$true] %s544
          %547 = dma.vmem_to_hbm [thread:$0]  %s545, 32, %s542, %s480
        $region44: #{tpu_custom_call.1} parent=23 // pred_fallthru
          _
      $region24: #{tpu_custom_call.1} parent=5 // pred_fallthru
        _
      %p548 = scmp.le.s32.totalorder 2, %s23
      // Predicated region
      $region45: #{tpu_custom_call.1} parent=5 // pred_check
        %p549 = pneg %p548
      $region46: #{tpu_custom_call.1} parent=5 // pred_check_branch
        %551 = sbr.rel (%p549) target = $region48
      $region47: #{tpu_custom_call.1} parent=5 // pred_region
        %s552 = ssub.s32 %s23, 2
        // Predicated region
        $region49: #{tpu_custom_call.1} parent=47 // pred_check
          %p553 = pneg %p94
        $region50: #{tpu_custom_call.1} parent=47 // pred_check_branch
          %555 = sbr.rel (%p553) target = $region52
        $region51: #{tpu_custom_call.1} parent=47 // pred_region
          %s556 = sand.u32 %s79, 1
          %s557 = scalar_lea.sflag [#allocation4], %s556
          %s558 = sand.u32 %s79, 1
          %s559 = smul.addr %s558, 2
          %s560 = scalar_lea.vmem [#allocation5], %s559
          %561 = dma.done %s557, 32
        $region52: #{tpu_custom_call.1} parent=47 // pred_fallthru
          _
        // Predicated region
        $region53: #{tpu_custom_call.1} parent=47 // pred_check
          %p562 = pneg %p122
        $region54: #{tpu_custom_call.1} parent=47 // pred_check_branch
          %564 = sbr.rel (%p562) target = $region56
        $region55: #{tpu_custom_call.1} parent=47 // pred_region
          %s565 = sand.u32 %s29, 1
          %s566 = scalar_lea.sflag [#allocation7], %s565
          %s567 = sand.u32 %s107, 1
          %s568 = smul.addr %s567, 2
          %s569 = scalar_lea.vmem [#allocation6], %s568
          %570 = dma.done %s566, 32
        $region56: #{tpu_custom_call.1} parent=47 // pred_fallthru
          _
        // Predicated region
        $region57: #{tpu_custom_call.1} parent=47 // pred_check
          %p571 = pneg %p150
        $region58: #{tpu_custom_call.1} parent=47 // pred_check_branch
          %573 = sbr.rel (%p571) target = $region60
        $region59: #{tpu_custom_call.1} parent=47 // pred_region
          %s574 = sand.u32 %s29, 1
          %s575 = scalar_lea.sflag [#allocation7], %s574
          %s576 = sand.u32 %s135, 1
          %s577 = smul.addr %s576, 2
          %s578 = scalar_lea.vmem [#allocation8], %s577
          %579 = dma.done %s575, 32
        $region60: #{tpu_custom_call.1} parent=47 // pred_fallthru
          _
        // Predicated region
        $region61: #{tpu_custom_call.1} parent=47 // pred_check
          %p580 = pneg %p178
        $region62: #{tpu_custom_call.1} parent=47 // pred_check_branch
          %582 = sbr.rel (%p580) target = $region64
        $region63: #{tpu_custom_call.1} parent=47 // pred_region
          %s583 = sand.u32 %s163, 1
          %s584 = scalar_lea.sflag [#allocation10], %s583
          %s585 = sand.u32 %s163, 1
          %s586 = smul.addr %s585, 2
          %s587 = scalar_lea.vmem [#allocation9], %s586
          %588 = dma.done %s584, 32
        $region64: #{tpu_custom_call.1} parent=47 // pred_fallthru
          _
      $region48: #{tpu_custom_call.1} parent=5 // pred_fallthru
        _
    $region6: #{tpu_custom_call.1} parent=1 // loop_footer
      %s27 = sadd.s32 1, %s23
    $region7: #{tpu_custom_call.1} parent=1 // loop_footer_branch
      %22 = sbr.rel target = $region3
    $region8: #{tpu_custom_call.1} parent=1 // loop_exit
      _
    %589 = vsyncpa [#allocation3], 1
    %s590 = scalar_lea.sflag [#allocation3], 1
    %591 = vsyncpa %s590, 1
    %592 = vsyncpa [#allocation4], 1
    %s593 = scalar_lea.sflag [#allocation4], 1
    %594 = vsyncpa %s593, 1
    %595 = vsyncpa [#allocation7], 1
    %s596 = scalar_lea.sflag [#allocation7], 1
    %597 = vsyncpa %s596, 1
    %598 = vsyncpa [#allocation10], 1
    %s599 = scalar_lea.sflag [#allocation10], 1
    %600 = vsyncpa %s599, 1

</llo_original>
